<compile_context>
chip_gen: v7x
topology: tpu7x:2x2x1
jax: 0.10.0
libtpu: 0.0.40
codegen_flags: <defaults>
</compile_context>

<pallas_src>
from functools import partial

import jax
import jax.numpy as jnp
from jax.experimental import pallas as pl
from jax.experimental.pallas import tpu as pltpu


def _round_up(n, m):
    return (n + m - 1) // m * m


# ---------------------------------------------------------------------------
# Parameter packing (done once, outside the hot path)
# ---------------------------------------------------------------------------
def pack_rnn_params(w_in, b_in, w_hh, mxu_dtype=None):
    """Transpose + zero-pad the RNNCell parameters for the Pallas kernels.

    Args:
      w_in: (H, I)  nn.Linear weight of input_layer (PyTorch layout)
      b_in: (H,)    bias of input_layer
      w_hh: (H, H)  nn.Linear weight of hidden_layer (no bias)
      mxu_dtype: optional dtype (e.g. jnp.bfloat16) for the matmul operands.
    Returns:
      w_in_t: (I,  Hp)  W_in^T, lane (N) dim zero-padded, K left unpadded
      w_hh_t: (Hp, Hp)  W_hh^T, both dims zero-padded (the carry is Hp wide)
      b_p:    (1, Hp)   zero-padded bias, float32
    """
    H, I = w_in.shape
    Hp = _round_up(H, 128)
    w_in_t = jnp.pad(w_in.T, ((0, 0), (0, Hp - H)))          # (I, Hp)
    w_hh_t = jnp.pad(w_hh.T, ((0, Hp - H), (0, Hp - H)))     # (Hp, Hp)
    if mxu_dtype is not None:
        w_in_t = w_in_t.astype(mxu_dtype)
        w_hh_t = w_hh_t.astype(mxu_dtype)
    b_p = jnp.pad(b_in, (0, Hp - H)).reshape(1, Hp).astype(jnp.float32)
    return w_in_t, w_hh_t, b_p


def rnn_cell_init(batch_size, hidden_size, dtype=jnp.float32):
    """Equivalent of RNNCell.init(batch_size, device)."""
    return jnp.zeros((batch_size, hidden_size), dtype)


# ---------------------------------------------------------------------------
# Single-step kernel (matches RNNCell.forward exactly)
# ---------------------------------------------------------------------------
def _rnn_cell_step_kernel(x_ref, h_ref, w_in_ref, w_hh_ref, b_ref, out_ref):
    # x_ref:    (Bp, I)   input           (f32 or bf16)
    # h_ref:    (Bp, Hp)  previous state  (f32 or bf16, zero-padded lanes)
    # w_in_ref: (I,  Hp)  W_in^T
    # w_hh_ref: (Hp, Hp)  W_hh^T
    # b_ref:    (1,  Hp)  bias (f32)
    # out_ref:  (Bp, Hp)  new hidden state (f32)
    acc = jnp.dot(x_ref[...], w_in_ref[...], preferred_element_type=jnp.float32)
    acc = acc + jnp.dot(h_ref[...], w_hh_ref[...],
                        preferred_element_type=jnp.float32)
    out_ref[...] = jnp.tanh(acc + b_ref[...]).astype(out_ref.dtype)


@partial(jax.jit, static_argnames=("mxu_dtype",))
def rnn_cell_forward_packed(x, state, w_in_t, w_hh_t, b_p, mxu_dtype=None):
    """One RNNCell step with pre-packed parameters (preferred when driving
    the cell step-by-step from Python)."""
    B, _ = x.shape
    H = state.shape[1]
    Hp = w_hh_t.shape[0]
    Bp = _round_up(B, 8)

    x_p = jnp.pad(x, ((0, Bp - B), (0, 0)))                  # I stays unpadded
    h_p = jnp.pad(state, ((0, Bp - B), (0, Hp - H)))
    if mxu_dtype is not None:
        x_p = x_p.astype(mxu_dtype)
        h_p = h_p.astype(mxu_dtype)

    out_p = pl.pallas_call(
        _rnn_cell_step_kernel,
        out_shape=jax.ShapeDtypeStruct((Bp, Hp), jnp.float32),
    )(x_p, h_p, w_in_t, w_hh_t, b_p)

    out = out_p[:B, :H].astype(state.dtype)
    return out, out


def rnn_cell_forward(x, state, w_in, b_in, w_hh, mxu_dtype=None):
    """Convenience wrapper that packs the params on every call.  For repeated
    per-step use, call pack_rnn_params once and use rnn_cell_forward_packed."""
    w_in_t, w_hh_t, b_p = pack_rnn_params(w_in, b_in, w_hh, mxu_dtype)
    return rnn_cell_forward_packed(x, state, w_in_t, w_hh_t, b_p,
                                   mxu_dtype=mxu_dtype)


# ---------------------------------------------------------------------------
# Fused T-step recurrence: one pallas_call for the whole sequence.
# grid = (batch_tiles, T // Tb); Tb timesteps per grid step; weights resident
# (single VMEM copy); hidden state carried in an f32 VMEM scratch.
# ---------------------------------------------------------------------------
def _rnn_seq_kernel(x_ref, h0_ref, w_in_ref, w_hh_ref, b_ref, out_ref, h_scr,
                    *, tb, mxu_dtype):
    # x_ref:    (Tb, bt, I)   this grid step's Tb inputs (f32, I unpadded)
    # h0_ref:   (bt, Hp)      initial state for this batch tile (f32)
    # w_in_ref: (I,  Hp)      resident W_in^T  (single VMEM copy)
    # w_hh_ref: (Hp, Hp)      resident W_hh^T  (single VMEM copy)
    # b_ref:    (1,  Hp)      resident bias (f32)
    # out_ref:  (Tb, bt, Hp)  this grid step's Tb outputs
    # h_scr:    (bt, Hp)      f32 hidden-state carry across time grid steps
    t_blk = pl.program_id(1)

    @pl.when(t_blk == 0)
    def _():
        h_scr[...] = h0_ref[...]

    bt, hp = h_scr.shape
    # Hoist the bias broadcast out of the unrolled step loop (no CSE in JAX).
    bias = pl.broadcast_to(b_ref[...], (bt, hp))

    # Statically unrolled loop over the Tb timesteps of this block.  The time
    # recurrence is inherently sequential; unrolling amortizes per-grid-step
    # overhead and produces one large lane-dense output writeback per step.
    for s in range(tb):
        x_s = x_ref[s]
        h_s = h_scr[...]
        if mxu_dtype is not None:
            x_s = x_s.astype(mxu_dtype)
            h_s = h_s.astype(mxu_dtype)
        acc = jnp.dot(x_s, w_in_ref[...], preferred_element_type=jnp.float32)
        acc = acc + jnp.dot(h_s, w_hh_ref[...],
                            preferred_element_type=jnp.float32)
        h_new = jnp.tanh(acc + bias)              # f32 epilogue (v5e-safe)
        h_scr[...] = h_new                        # f32 carry (no drift over T)
        out_ref[s] = h_new.astype(out_ref.dtype)


@partial(jax.jit,
         static_argnames=("mxu_dtype", "out_dtype", "time_block", "batch_tile"))
def rnn_cell_sequence(xs, h0, w_in, b_in, w_hh, mxu_dtype=None,
                      out_dtype=jnp.float32, time_block=8, batch_tile=256):
    """Run the RNNCell recurrence for all T steps inside a single pallas_call.

    Args:
      xs: (T, B, I) float32 inputs
      h0: (B, H)    float32 initial state
      mxu_dtype:    optional matmul-operand dtype (jnp.bfloat16 recommended on
                    v6e/v7x); accumulation, bias, tanh and the carry stay f32.
      out_dtype:    dtype of the emitted per-step outputs.
      time_block:   Tb timesteps processed per grid step.
      batch_tile:   batch tile size (>= 2 tiles lets v7x use both TensorCores).
    Returns:
      (T, B, H) out_dtype, out[t] == hidden state after step t.
    """
    T, B, I = xs.shape
    H = w_in.shape[0]
    Hp = _round_up(H, 128)

    tb = max(1, min(time_block, T))
    Tp = _round_up(T, tb)

    Bp = _round_up(B, 8)
    bt = min(batch_tile, Bp)
    Bp = _round_up(Bp, bt)

    w_in_t, w_hh_t, b_p = pack_rnn_params(w_in, b_in, w_hh, mxu_dtype)

    xs_p = jnp.pad(xs, ((0, Tp - T), (0, Bp - B), (0, 0)))   # I stays unpadded
    h0_p = jnp.pad(h0, ((0, Bp - B), (0, Hp - H)))

    n_b = Bp // bt
    n_t = Tp // tb

    # VMEM budget: single-copy resident weights/bias + double-buffered streamed
    # blocks + the f32 carry scratch; never below the 32 MiB default.
    w_item = jnp.dtype(mxu_dtype).itemsize if mxu_dtype is not None else 4
    out_item = jnp.dtype(out_dtype).itemsize
    resident = (I * Hp + Hp * Hp) * w_item + Hp * 4
    streamed = 2 * (tb * bt * I * 4 + tb * bt * Hp * out_item + bt * Hp * 4)
    scratch = bt * Hp * 4
    vmem_limit = min(
        max(32 << 20, int(1.5 * (resident + streamed + scratch)) + (2 << 20)),
        128 << 20)

    out = pl.pallas_call(
        partial(_rnn_seq_kernel, tb=tb, mxu_dtype=mxu_dtype),
        out_shape=jax.ShapeDtypeStruct((Tp, Bp, Hp), out_dtype),
        grid=(n_b, n_t),
        in_specs=[
            # Streamed, pipelined per-grid-step blocks:
            pl.BlockSpec((tb, bt, I), lambda b, t: (t, b, 0)),   # x (unpadded I)
            pl.BlockSpec((bt, Hp), lambda b, t: (b, 0)),         # h0 per batch tile
            # Resident params: whole array, a single copy in VMEM (no
            # double-buffer duplication of the weights).
            pl.BlockSpec(memory_space=pltpu.MemorySpace.VMEM),   # W_in^T
            pl.BlockSpec(memory_space=pltpu.MemorySpace.VMEM),   # W_hh^T
            pl.BlockSpec(memory_space=pltpu.MemorySpace.VMEM),   # bias
        ],
        out_specs=pl.BlockSpec((tb, bt, Hp), lambda b, t: (t, b, 0)),
        scratch_shapes=[pltpu.VMEM((bt, Hp), jnp.float32)],      # hidden carry
        # Time is a true recurrence -> sequential ("arbitrary"); batch tiles are
        # independent -> "parallel" (uses v7x's second TensorCore when n_b >= 2).
        compiler_params=pltpu.CompilerParams(
            dimension_semantics=("parallel", "arbitrary"),
            vmem_limit_bytes=vmem_limit,
        ),
    )(xs_p, h0_p, w_in_t, w_hh_t, b_p)

    return out[:T, :B, :H]


# ---------------------------------------------------------------------------
# Pure-JAX references (match the PyTorch module exactly)
# ---------------------------------------------------------------------------
def _reference_step(x, h, w_in, b_in, w_hh):
    return jnp.tanh(x @ w_in.T + b_in + h @ w_hh.T)


def _reference_sequence(xs, h0, w_in, b_in, w_hh):
    def step(h, x):
        h_new = _reference_step(x, h, w_in, b_in, w_hh)
        return h_new, h_new
    _, ys = jax.lax.scan(step, h0, xs)
    return ys


if __name__ == "__main__":
    batch = 8
    input_size = 32
    hidden_size = 64
    seq_len = 8

    key = jax.random.PRNGKey(0)
    k_x, k_win, k_bin, k_whh, k_h, k_xs = jax.random.split(key, 6)

    # Parameters in nn.Linear layout.
    w_in = jax.random.normal(k_win, (hidden_size, input_size), jnp.float32) * 0.1
    b_in = jax.random.normal(k_bin, (hidden_size,), jnp.float32) * 0.1
    w_hh = jax.random.normal(k_whh, (hidden_size, hidden_size), jnp.float32) * 0.1

    x = jax.random.normal(k_x, (batch, input_size), jnp.float32)
    state = jax.random.normal(k_h, (batch, hidden_size), jnp.float32)

    # --- single step, f32 MXU path -------------------------------------
    output, new_state = rnn_cell_forward(x, state, w_in, b_in, w_hh)
    jax.block_until_ready(output)
    ref = _reference_step(x, state, w_in, b_in, w_hh)
    assert output.shape == (batch, hidden_size)
    assert jnp.allclose(output, ref, atol=1e-5, rtol=1e-5)
    assert jnp.allclose(new_state, output)

    # zero-initialized state (module's init()).
    zero_state = rnn_cell_init(batch, hidden_size)
    out0, _ = rnn_cell_forward(x, zero_state, w_in, b_in, w_hh)
    jax.block_until_ready(out0)
    ref0 = _reference_step(x, zero_state, w_in, b_in, w_hh)
    assert jnp.allclose(out0, ref0, atol=1e-5, rtol=1e-5)

    # --- single step, bf16 MXU operands (f32 accumulate + epilogue) ----
    out_bf, _ = rnn_cell_forward(x, state, w_in, b_in, w_hh,
                                 mxu_dtype=jnp.bfloat16)
    jax.block_until_ready(out_bf)
    assert jnp.allclose(out_bf, ref, atol=3e-2, rtol=3e-2)

    # --- fused T-step recurrence, f32 ----------------------------------
    xs = jax.random.normal(k_xs, (seq_len, batch, input_size), jnp.float32)
    h0 = jnp.zeros((batch, hidden_size), jnp.float32)
    refs = _reference_sequence(xs, h0, w_in, b_in, w_hh)

    outs = rnn_cell_sequence(xs, h0, w_in, b_in, w_hh)
    jax.block_until_ready(outs)
    assert outs.shape == (seq_len, batch, hidden_size)
    assert jnp.allclose(outs, refs, atol=1e-4, rtol=1e-4)

    # --- fused recurrence, bf16 MXU operands (f32 carry) ---------------
    outs_bf = rnn_cell_sequence(xs, h0, w_in, b_in, w_hh,
                                mxu_dtype=jnp.bfloat16)
    jax.block_until_ready(outs_bf)
    assert jnp.allclose(outs_bf, refs, atol=5e-2, rtol=5e-2)

    # --- multiple time-blocks per call (carry across grid steps) -------
    outs_tb = rnn_cell_sequence(xs, h0, w_in, b_in, w_hh, time_block=4)
    jax.block_until_ready(outs_tb)
    assert jnp.allclose(outs_tb, refs, atol=1e-4, rtol=1e-4)

    print("KERNEL_OK")
</pallas_src>

<mosaic_0001>
module attributes {stable_mosaic.version = 11 : i64} {
  func.func @_rnn_cell_step_kernel(%arg0: memref<8x32xf32, #tpu.memory_space<vmem>>, %arg1: memref<8x128xf32, #tpu.memory_space<vmem>>, %arg2: memref<32x128xf32, #tpu.memory_space<vmem>>, %arg3: memref<128x128xf32, #tpu.memory_space<vmem>>, %arg4: memref<1x128xf32, #tpu.memory_space<vmem>>, %arg5: memref<8x128xf32, #tpu.memory_space<vmem>>) attributes {dimension_semantics = [], scalar_prefetch = 0 : i64, scratch_operands = 0 : i64, tpu.core_type = #tpu.core_type<tc>} {
    %c0 = arith.constant 0 : index
    %c0_0 = arith.constant 0 : index
    %0 = vector.load %arg0[%c0, %c0_0] : memref<8x32xf32, #tpu.memory_space<vmem>>, vector<8x32xf32>
    %c0_1 = arith.constant 0 : index
    %c0_2 = arith.constant 0 : index
    %1 = vector.load %arg2[%c0_1, %c0_2] : memref<32x128xf32, #tpu.memory_space<vmem>>, vector<32x128xf32>
    %cst = arith.constant dense<0.000000e+00> : vector<8x128xf32>
    %2 = tpu.matmul %0, %1, %cst {dimension_numbers = #tpu.dot_dimension_numbers<[1], [0], [0], [1], [0, 0, 1, 1], [], []>} : vector<8x32xf32>, vector<32x128xf32>, vector<8x128xf32> -> vector<8x128xf32>
    %c0_3 = arith.constant 0 : index
    %c0_4 = arith.constant 0 : index
    %3 = vector.load %arg1[%c0_3, %c0_4] : memref<8x128xf32, #tpu.memory_space<vmem>>, vector<8x128xf32>
    %c0_5 = arith.constant 0 : index
    %c0_6 = arith.constant 0 : index
    %4 = vector.load %arg3[%c0_5, %c0_6] : memref<128x128xf32, #tpu.memory_space<vmem>>, vector<128x128xf32>
    %cst_7 = arith.constant dense<0.000000e+00> : vector<8x128xf32>
    %5 = tpu.matmul %3, %4, %cst_7 {dimension_numbers = #tpu.dot_dimension_numbers<[1], [0], [0], [1], [0, 0, 1, 1], [], []>} : vector<8x128xf32>, vector<128x128xf32>, vector<8x128xf32> -> vector<8x128xf32>
    %6 = arith.addf %2, %5 : vector<8x128xf32>
    %c0_8 = arith.constant 0 : index
    %c0_9 = arith.constant 0 : index
    %7 = vector.load %arg4[%c0_8, %c0_9] : memref<1x128xf32, #tpu.memory_space<vmem>>, vector<1x128xf32>
    %8 = vector.broadcast %7 : vector<1x128xf32> to vector<8x128xf32>
    %9 = arith.addf %6, %8 : vector<8x128xf32>
    %10 = math.tanh %9 : vector<8x128xf32>
    %c0_10 = arith.constant 0 : index
    %c0_11 = arith.constant 0 : index
    %11 = vector.load %arg5[%c0_10, %c0_11] : memref<8x128xf32, #tpu.memory_space<vmem>>, vector<8x128xf32>
    tpu.vector_store %arg5[%c0_10, %c0_11], %10 {strides = array<i32>} : memref<8x128xf32, #tpu.memory_space<vmem>>, vector<8x128xf32>,
    return
  }
}

</mosaic_0001>

<llo_original>
// kernel: rnn_cell_forward_packed.1
$region0: #{rnn_cell_forward_packed.1}
  #allocation0 [shape = 'u32[]', space=smem, size = 0x4, offset = 0x4, fixed_abs, tag = 'smem constant byte address 0x4 - core index']
  #allocation1 [shape = 'u32[144,128]{1,0:T(1,128)}', space=vmem, size = 0x12000, scoped, tag = 'internal scratch']
  %s0 = inlined_call_operand.vmem [shape: f32[8,32], index: 0, kind: input, shape index: {}]
  %s1 = inlined_call_operand.vmem [shape: f32[8,128], index: 1, kind: input, shape index: {}]
  %s2 = inlined_call_operand.hbm [shape: f32[32,128], index: 2, kind: input, shape index: {}]
  %s3 = inlined_call_operand.hbm [shape: f32[128,128], index: 3, kind: input, shape index: {}]
  %s4 = inlined_call_operand.vmem [shape: f32[1,128], index: 4, kind: input, shape index: {}]
  %s5 = inlined_call_operand.vmem [shape: f32[8,128], index: 5, kind: output, shape index: {}]
  %s6 = sld [smem:[#allocation0]]
  $region38: #{rnn_cell_forward_packed.1} parent=0
    _
  %s8 = ssub.s32 1, %s6
  %s9 = scalar_select 0, %s8, %s6
  $region1: #{rnn_cell_forward_packed.1} parent=0
    #allocation2 [shape = 'u8[16384]{0}', space=vmem, size = 0x4000, scoped, tag = 'input window, operand 2, single buffered']
    #allocation3 [shape = 's32[1]{0}', space=sflag, size = 0x4, scoped, tag = 'scoped memory for rnn_cell_forward_packed.1']
    #allocation4 [shape = 'u8[65536]{0}', space=vmem, size = 0x10000, scoped, tag = 'input window, operand 3, single buffered']
    #allocation5 [shape = 's32[1]{0}', space=sflag, size = 0x4, scoped, tag = 'scoped memory for rnn_cell_forward_packed.1']
    %10 = vsyncpa [#allocation3], 0
    %11 = vsyncpa [#allocation5], 0
    // Predicated region
    $region2: #{rnn_cell_forward_packed.1} parent=1 // pred_check
      _
    $region3: #{rnn_cell_forward_packed.1} parent=1 // pred_check_branch
      %13 = sbr.rel (0) target = $region5
    $region4: #{rnn_cell_forward_packed.1} parent=1 // pred_region
      _
    $region5: #{rnn_cell_forward_packed.1} parent=1 // pred_fallthru
      _
    // Predicated region
    $region6: #{rnn_cell_forward_packed.1} parent=1 // pred_check
      _
    $region7: #{rnn_cell_forward_packed.1} parent=1 // pred_check_branch
      %15 = sbr.rel (0) target = $region9
    $region8: #{rnn_cell_forward_packed.1} parent=1 // pred_region
      _
    $region9: #{rnn_cell_forward_packed.1} parent=1 // pred_fallthru
      _
    // Predicated region
    $region10: #{rnn_cell_forward_packed.1} parent=1 // pred_check
      _
    $region11: #{rnn_cell_forward_packed.1} parent=1 // pred_check_branch
      %17 = sbr.rel (0) target = $region13
    $region12: #{rnn_cell_forward_packed.1} parent=1 // pred_region
      %s19 = ssub.s32 512, 512
      %20 = vsyncadd [#allocation3], %s19
      %s21 = sshll.u32 [#allocation2], 4
      %s22 = int_to_ptr.vmem [resolvable:$true] %s21
      %27 = dma.hbm_to_vmem [thread:$0]  %s2, 512, %s22, [#allocation3], 128, 128, 8
    $region13: #{rnn_cell_forward_packed.1} parent=1 // pred_fallthru
      _
    // Predicated region
    $region14: #{rnn_cell_forward_packed.1} parent=1 // pred_check
      _
    $region15: #{rnn_cell_forward_packed.1} parent=1 // pred_check_branch
      %29 = sbr.rel (0) target = $region17
    $region16: #{rnn_cell_forward_packed.1} parent=1 // pred_region
      %s31 = ssub.s32 2048, 2048
      %32 = vsyncadd [#allocation5], %s31
      %s33 = sshll.u32 [#allocation4], 4
      %s34 = int_to_ptr.vmem [resolvable:$true] %s33
      %39 = dma.hbm_to_vmem [thread:$0]  %s3, 2048, %s34, [#allocation5], 128, 128, 8
    $region17: #{rnn_cell_forward_packed.1} parent=1 // pred_fallthru
      _
    // Predicated region
    $region18: #{rnn_cell_forward_packed.1} parent=1 // pred_check
      _
    $region19: #{rnn_cell_forward_packed.1} parent=1 // pred_check_branch
      %41 = sbr.rel (0) target = $region21
    $region20: #{rnn_cell_forward_packed.1} parent=1 // pred_region
      _
    $region21: #{rnn_cell_forward_packed.1} parent=1 // pred_fallthru
      _
    // Predicated region
    $region22: #{rnn_cell_forward_packed.1} parent=1 // pred_check
      _
    $region23: #{rnn_cell_forward_packed.1} parent=1 // pred_check_branch
      %43 = sbr.rel (0) target = $region25
    $region24: #{rnn_cell_forward_packed.1} parent=1 // pred_region
      %44 = dma.done [#allocation3], 512
    $region25: #{rnn_cell_forward_packed.1} parent=1 // pred_fallthru
      _
    // Predicated region
    $region26: #{rnn_cell_forward_packed.1} parent=1 // pred_check
      _
    $region27: #{rnn_cell_forward_packed.1} parent=1 // pred_check_branch
      %46 = sbr.rel (0) target = $region29
    $region28: #{rnn_cell_forward_packed.1} parent=1 // pred_region
      %47 = dma.done [#allocation5], 2048
    $region29: #{rnn_cell_forward_packed.1} parent=1 // pred_fallthru
      _
    %v48 = vld [vmem:[%s0] sm:$0xff]
    %v49 = vld [vmem:[#allocation2] sm:$0xff]
    %v50 = vld [vmem:[#allocation2 + $0x8] sm:$0xff]
    %v51 = vld [vmem:[#allocation2 + $0x10] sm:$0xff]
    %v52 = vld [vmem:[#allocation2 + $0x18] sm:$0xff]
    %v53 = vld [vmem:[%s1] sm:$0xff]
    %v54 = vld [vmem:[#allocation4] sm:$0xff]
    %v55 = vld [vmem:[#allocation4 + $0x8] sm:$0xff]
    %v56 = vld [vmem:[#allocation4 + $0x10] sm:$0xff]
    %v57 = vld [vmem:[#allocation4 + $0x18] sm:$0xff]
    %v58 = vld [vmem:[#allocation4 + $0x20] sm:$0xff]
    %v59 = vld [vmem:[#allocation4 + $0x28] sm:$0xff]
    %v60 = vld [vmem:[#allocation4 + $0x30] sm:$0xff]
    %v61 = vld [vmem:[#allocation4 + $0x38] sm:$0xff]
    %v62 = vld [vmem:[#allocation4 + $0x40] sm:$0xff]
    %v63 = vld [vmem:[#allocation4 + $0x48] sm:$0xff]
    %v64 = vld [vmem:[#allocation4 + $0x50] sm:$0xff]
    %v65 = vld [vmem:[#allocation4 + $0x58] sm:$0xff]
    %v66 = vld [vmem:[#allocation4 + $0x60] sm:$0xff]
    %v67 = vld [vmem:[#allocation4 + $0x68] sm:$0xff]
    %v68 = vld [vmem:[#allocation4 + $0x70] sm:$0xff]
    %v69 = vld [vmem:[#allocation4 + $0x78] sm:$0xff]
    %70 = vmatprep.subr.mxu0 0.0
    %71 = vmatpush1.msra.mxu0 %v54
    %72 = vmatprep.subr.mxu0 0.0
    %73 = vmatpush1.msra.mxu0 %v55
    %74 = vmatprep.subr.mxu0 0.0
    %75 = vmatpush1.msra.mxu0 %v56
    %76 = vmatprep.subr.mxu0 0.0
    %77 = vmatpush1.msra.mxu0 %v57
    %78 = vmatprep.subr.mxu0 0.0
    %79 = vmatpush1.msra.mxu0 %v58
    %80 = vmatprep.subr.mxu0 0.0
    %81 = vmatpush1.msra.mxu0 %v59
    %82 = vmatprep.subr.mxu0 0.0
    %83 = vmatpush1.msra.mxu0 %v60
    %84 = vmatprep.subr.mxu0 0.0
    %85 = vmatpush1.msra.mxu0 %v61
    %86 = vmatprep.subr.mxu0 0.0
    %87 = vmatpush1.msra.mxu0 %v62
    %88 = vmatprep.subr.mxu0 0.0
    %89 = vmatpush1.msra.mxu0 %v63
    %90 = vmatprep.subr.mxu0 0.0
    %91 = vmatpush1.msra.mxu0 %v64
    %92 = vmatprep.subr.mxu0 0.0
    %93 = vmatpush1.msra.mxu0 %v65
    %94 = vmatprep.subr.mxu0 0.0
    %95 = vmatpush1.msra.mxu0 %v66
    %96 = vmatprep.subr.mxu0 0.0
    %97 = vmatpush1.msra.mxu0 %v67
    %98 = vmatprep.subr.mxu0 0.0
    %99 = vmatpush1.msra.mxu0 %v68
    %100 = vmatprep.subr.mxu0 0.0
    %101 = vmatpush1.msra.mxu0 %v69
    %102 = vmatprep.subr.mxu0 0.0
    %103 = vmatpush1.msra.mxu0 0.0
    %104 = vmatprep.subr.mxu0 0.0
    %105 = vmatpush1.msra.mxu0 0.0
    %106 = vmatprep.subr.mxu0 0.0
    %107 = vmatpush1.msra.mxu0 0.0
    %108 = vmatprep.subr.mxu0 0.0
    %109 = vmatpush1.msra.mxu0 0.0
    %110 = vmatprep.subr.mxu0 0.0
    %111 = vmatpush1.msra.mxu0 0.0
    %112 = vmatprep.subr.mxu0 0.0
    %113 = vmatpush1.msra.mxu0 0.0
    %114 = vmatprep.subr.mxu0 0.0
    %115 = vmatpush1.msra.mxu0 0.0
    %116 = vmatprep.subr.mxu0 0.0
    %117 = vmatpush1.msra.mxu0 0.0
    %118 = vmatprep.subr.mxu0 0.0
    %119 = vmatpush1.msra.mxu0 0.0
    %120 = vmatprep.subr.mxu0 0.0
    %121 = vmatpush1.msra.mxu0 0.0
    %122 = vmatprep.subr.mxu0 0.0
    %123 = vmatpush1.msra.mxu0 0.0
    %124 = vmatprep.subr.mxu0 0.0
    %125 = vmatpush1.msra.mxu0 0.0
    %126 = vmatprep.subr.mxu0 0.0
    %127 = vmatpush1.msra.mxu0 0.0
    %128 = vmatprep.subr.mxu0 0.0
    %129 = vmatpush1.msra.mxu0 0.0
    %130 = vmatprep.subr.mxu0 0.0
    %131 = vmatpush1.msra.mxu0 0.0
    %132 = vmatprep.subr.mxu0 0.0
    %133 = vmatpush1.msra.mxu0 0.0
    %134 = vmatprep.mubr.f32.mxu0 0.0
    %135 = vmatmul.mubr.f32.gmra.mrb[0].mxu0 %v53
    %v136 = vpop.f32.mrb[0].mxu0
    %v137 = vadd.f32 0.0, %v136
    %v138 = vpop.f32.mrb[0].mxu0
    %139 = vdwg.mxu0
    %vm140 = vcmask 261120
    %v142 = vsel %vm140, %v48, 0
    %144 = vmatprep.subr.mxu0 0.0
    %145 = vmatpush1.msra.mxu0 %v49
    %146 = vmatprep.subr.mxu0 0.0
    %147 = vmatpush1.msra.mxu0 %v50
    %148 = vmatprep.subr.mxu0 0.0
    %149 = vmatpush1.msra.mxu0 %v51
    %150 = vmatprep.subr.mxu0 0.0
    %151 = vmatpush1.msra.mxu0 %v52
    %152 = vmatprep.subr.mxu0 0.0
    %153 = vmatpush1.msra.mxu0 0.0
    %154 = vmatprep.subr.mxu0 0.0
    %155 = vmatpush1.msra.mxu0 0.0
    %156 = vmatprep.subr.mxu0 0.0
    %157 = vmatpush1.msra.mxu0 0.0
    %158 = vmatprep.subr.mxu0 0.0
    %159 = vmatpush1.msra.mxu0 0.0
    %160 = vmatprep.subr.mxu0 0.0
    %161 = vmatpush1.msra.mxu0 0.0
    %162 = vmatprep.subr.mxu0 0.0
    %163 = vmatpush1.msra.mxu0 0.0
    %164 = vmatprep.subr.mxu0 0.0
    %165 = vmatpush1.msra.mxu0 0.0
    %166 = vmatprep.subr.mxu0 0.0
    %167 = vmatpush1.msra.mxu0 0.0
    %168 = vmatprep.subr.mxu0 0.0
    %169 = vmatpush1.msra.mxu0 0.0
    %170 = vmatprep.subr.mxu0 0.0
    %171 = vmatpush1.msra.mxu0 0.0
    %172 = vmatprep.subr.mxu0 0.0
    %173 = vmatpush1.msra.mxu0 0.0
    %174 = vmatprep.subr.mxu0 0.0
    %175 = vmatpush1.msra.mxu0 0.0
    %176 = vmatprep.subr.mxu0 0.0
    %177 = vmatpush1.msra.mxu0 0.0
    %178 = vmatprep.subr.mxu0 0.0
    %179 = vmatpush1.msra.mxu0 0.0
    %180 = vmatprep.subr.mxu0 0.0
    %181 = vmatpush1.msra.mxu0 0.0
    %182 = vmatprep.subr.mxu0 0.0
    %183 = vmatpush1.msra.mxu0 0.0
    %184 = vmatprep.subr.mxu0 0.0
    %185 = vmatpush1.msra.mxu0 0.0
    %186 = vmatprep.subr.mxu0 0.0
    %187 = vmatpush1.msra.mxu0 0.0
    %188 = vmatprep.subr.mxu0 0.0
    %189 = vmatpush1.msra.mxu0 0.0
    %190 = vmatprep.subr.mxu0 0.0
    %191 = vmatpush1.msra.mxu0 0.0
    %192 = vmatprep.subr.mxu0 0.0
    %193 = vmatpush1.msra.mxu0 0.0
    %194 = vmatprep.subr.mxu0 0.0
    %195 = vmatpush1.msra.mxu0 0.0
    %196 = vmatprep.subr.mxu0 0.0
    %197 = vmatpush1.msra.mxu0 0.0
    %198 = vmatprep.subr.mxu0 0.0
    %199 = vmatpush1.msra.mxu0 0.0
    %200 = vmatprep.subr.mxu0 0.0
    %201 = vmatpush1.msra.mxu0 0.0
    %202 = vmatprep.subr.mxu0 0.0
    %203 = vmatpush1.msra.mxu0 0.0
    %204 = vmatprep.subr.mxu0 0.0
    %205 = vmatpush1.msra.mxu0 0.0
    %206 = vmatprep.subr.mxu0 0.0
    %207 = vmatpush1.msra.mxu0 0.0
    %208 = vmatprep.mubr.f32.mxu0 0.0
    %209 = vmatmul.mubr.f32.gmra.mrb[0].mxu0 %v142
    %v210 = vpop.f32.mrb[0].mxu0
    %v211 = vadd.f32 %v137, %v210
    %v212 = vpop.f32.mrb[0].mxu0
    %213 = vdwg.mxu0
    %v214 = vld [vmem:[%s4] sm:$0x1]
    %v216 = vlaneseq
    %v217 = vshrl.u32 %v216, 7
    %v218 = vsub.s32 0, %v217
    %v219 = vrot.slane %v214, %v218
    %v221 = vadd.f32 %v211, %v219
    %v222 = vtanh.pop %v221
    %223 = vst [vmem:[%s5] sm:$0xff] %v222
    // Predicated region
    $region30: #{rnn_cell_forward_packed.1} parent=1 // pred_check
      _
    $region31: #{rnn_cell_forward_packed.1} parent=1 // pred_check_branch
      %225 = sbr.rel (0) target = $region33
    $region32: #{rnn_cell_forward_packed.1} parent=1 // pred_region
      _
    $region33: #{rnn_cell_forward_packed.1} parent=1 // pred_fallthru
      _
    // Predicated region
    $region34: #{rnn_cell_forward_packed.1} parent=1 // pred_check
      _
    $region35: #{rnn_cell_forward_packed.1} parent=1 // pred_check_branch
      %227 = sbr.rel (0) target = $region37
    $region36: #{rnn_cell_forward_packed.1} parent=1 // pred_region
      _
    $region37: #{rnn_cell_forward_packed.1} parent=1 // pred_fallthru
      _
    %228 = vsyncpa [#allocation3], 1
    %229 = vsyncpa [#allocation5], 1

</llo_original>
